<compile_context>
chip_gen: v7x
topology: tpu7x:2x2x1
jax: 0.10.0
libtpu: 0.0.40
codegen_flags: <defaults>
</compile_context>

<pallas_src>
import functools

import jax
import jax.numpy as jnp
from jax import lax
from jax.experimental import pallas as pl
from jax.experimental.pallas import tpu as pltpu


# ---------------------------------------------------------------------------
# Pallas kernels
# ---------------------------------------------------------------------------
def _ca_scale_kernel(inv_hw, high_ref, w1_ref, b1_ref, w2_ref, b2_ref,
                     scale_ref, sum_ref):
    """CALayer gate. grid = (N, HW_tiles); HW is the reduction axis.

    high_ref : (1, C, t_hw)  pixel tile of `high` (zero-padded tail is harmless)
    w1_ref   : (Cmid, C)     conv1 weight (out, in)
    b1_ref   : (Cmid, 1)
    w2_ref   : (C, Cmid)     conv2 weight (out, in)
    b2_ref   : (C, 1)
    scale_ref: (1, C, 1)     output gate (written at the last HW tile)
    sum_ref  : (C, 1)        VMEM scratch: running per-channel spatial sum
    """
    t = pl.program_id(1)

    @pl.when(t == 0)
    def _():
        sum_ref[...] = jnp.zeros_like(sum_ref)

    sum_ref[...] += jnp.sum(high_ref[0], axis=-1, keepdims=True)   # (C, 1)

    @pl.when(t == pl.num_programs(1) - 1)
    def _():
        mean = sum_ref[...] * inv_hw                                # (C, 1)
        h = jnp.dot(w1_ref[...], mean, preferred_element_type=jnp.float32)
        h = jnp.maximum(h + b1_ref[...], 0.0)                       # (Cmid, 1)
        y = jnp.dot(w2_ref[...], h, preferred_element_type=jnp.float32)
        scale_ref[0] = jax.nn.sigmoid(y + b2_ref[...]).astype(scale_ref.dtype)


def _fuse_kernel(low_ref, high_ref, ca_ref, w1_ref, b1_ref, w2c_ref, b2_ref,
                 o_ref):
    """PALayer(low) fused with  out = low * ca + high * pa.

    low_ref / high_ref : (1, C, t_hw)   NCHW pixel tiles (pixels on lanes)
    ca_ref             : (1, C, 1)      CALayer gate for this batch element
    w1_ref             : (Cmid, C)      PA conv1 weight (out, in)
    b1_ref             : (Cmid, 1)
    w2c_ref            : (Cmid, 1)      PA conv2 weight as a broadcast column
    b2_ref             : (1, 1)
    o_ref              : (1, C, t_hw)   lane-dense output tile
    """
    lo = low_ref[0]                                                  # (C, t_hw)
    hi = high_ref[0]                                                 # (C, t_hw)

    # 1x1 conv C -> C//8 over the channel (sublane) axis; MXU matmul.
    h = jnp.dot(w1_ref[...], lo, preferred_element_type=jnp.float32)  # (Cmid, t_hw)
    h = jnp.maximum(h + b1_ref[...], 0.0)

    # 1x1 conv C//8 -> 1 as a VPU multiply + sublane reduction (no MXU).
    pa = jnp.sum(h * w2c_ref[...], axis=0, keepdims=True) + b2_ref[...]  # (1, t_hw)
    pa = jax.nn.sigmoid(pa)

    o_ref[0] = (lo * ca_ref[0] + hi * pa).astype(o_ref.dtype)


# ---------------------------------------------------------------------------
# Wrappers
# ---------------------------------------------------------------------------
def _round_up(a, b):
    return (a + b - 1) // b * b


def _conv3x3_same(x, w, b):
    # Conv2d(C, C, 3, stride=1, padding=1), weight layout OIHW.
    y = lax.conv_general_dilated(
        x, w, window_strides=(1, 1), padding=((1, 1), (1, 1)),
        dimension_numbers=("NCHW", "OIHW", "NCHW"))
    return y + b[None, :, None, None]


def _deconv3x3_s2(x, w, b):
    # ConvTranspose2d(in, out, 3, stride=2, padding=1, output_padding=1),
    # PyTorch weight layout (in, out, kH, kW).  Equivalent forward conv on the
    # stride-dilated input with the flipped, (in,out)->(out,in) kernel and
    # asymmetric padding (k-1-p, k-1-p+output_padding) = (1, 2).
    w_flip = jnp.transpose(w[:, :, ::-1, ::-1], (1, 0, 2, 3))
    y = lax.conv_general_dilated(
        x, w_flip, window_strides=(1, 1), padding=((1, 2), (1, 2)),
        lhs_dilation=(2, 2), dimension_numbers=("NCHW", "OIHW", "NCHW"))
    return y + b[None, :, None, None]


def _fused_ca_pa_combine(low, high, p, *, t_hw_req=2048):
    """low, high: (N, C, H, W) float32.  Returns (N, C, H, W)."""
    N, C, H, W = low.shape
    assert high.shape == (N, C, H, W)
    HW = H * W
    Cmid = p["pa_w1"].shape[0]
    dtype = low.dtype

    # -- pick a lane-dense pixel tile ---------------------------------------
    # Cap the double-buffered (low + high + out) working set at ~16 MiB so big
    # tiles remain safe on v5e (16 MiB default scoped VMEM) and v7x (64 MiB
    # physical VMEM); explicitly raise the scoped limit to 32 MiB.
    bytes_per_px_col = 6 * C * 4                    # 3 tensors x 2 buffers x f32
    cap = max(128, (16 * 1024 * 1024) // bytes_per_px_col // 128 * 128)
    t_hw = max(128, min(_round_up(t_hw_req, 128), _round_up(HW, 128), cap))
    HWp = _round_up(HW, t_hw)
    n_t = HWp // t_hw

    # NCHW stays NCHW: (N,C,H,W) -> (N,C,H*W) is a free reshape (no transpose).
    pad = HWp - HW
    low_flat = low.reshape(N, C, HW)
    high_flat = high.reshape(N, C, HW)
    if pad:
        low_p = jnp.pad(low_flat, ((0, 0), (0, 0), (0, pad)))
        high_p = jnp.pad(high_flat, ((0, 0), (0, 0), (0, pad)))
    else:
        low_p, high_p = low_flat, high_flat

    # 1x1-conv weights as (out, in) matrices / column biases.
    ca_w1 = p["ca_w1"].reshape(Cmid, C)
    ca_b1 = p["ca_b1"].reshape(Cmid, 1)
    ca_w2 = p["ca_w2"].reshape(C, Cmid)
    ca_b2 = p["ca_b2"].reshape(C, 1)
    pa_w1 = p["pa_w1"].reshape(Cmid, C)
    pa_b1 = p["pa_b1"].reshape(Cmid, 1)
    pa_w2c = p["pa_w2"].reshape(Cmid, 1)
    pa_b2 = p["pa_b2"].reshape(1, 1)

    grid = (N, n_t)
    vmem_limit = 32 * 1024 * 1024

    # -- pass 1: CALayer(high) -> per-(n, c) channel gate --------------------
    ca_scale = pl.pallas_call(
        functools.partial(_ca_scale_kernel, 1.0 / float(HW)),
        out_shape=jax.ShapeDtypeStruct((N, C, 1), jnp.float32),
        grid_spec=pltpu.PrefetchScalarGridSpec(
            num_scalar_prefetch=0,
            grid=grid,
            in_specs=[
                pl.BlockSpec((1, C, t_hw), lambda n, t: (n, 0, t)),   # high
                pl.BlockSpec((Cmid, C), lambda n, t: (0, 0)),         # ca w1
                pl.BlockSpec((Cmid, 1), lambda n, t: (0, 0)),         # ca b1
                pl.BlockSpec((C, Cmid), lambda n, t: (0, 0)),         # ca w2
                pl.BlockSpec((C, 1), lambda n, t: (0, 0)),            # ca b2
            ],
            out_specs=pl.BlockSpec((1, C, 1), lambda n, t: (n, 0, 0)),
            scratch_shapes=[pltpu.VMEM((C, 1), jnp.float32)],
        ),
        compiler_params=pltpu.CompilerParams(
            dimension_semantics=("parallel", "arbitrary"),
            vmem_limit_bytes=vmem_limit),
    )(high_p, ca_w1, ca_b1, ca_w2, ca_b2)

    # -- pass 2: PALayer(low) fused with low*ca + high*pa --------------------
    # (Optional further knob: pipeline_mode=pl.Buffered(3) on the pixel tiles.)
    out_p = pl.pallas_call(
        _fuse_kernel,
        out_shape=jax.ShapeDtypeStruct((N, C, HWp), dtype),
        grid_spec=pltpu.PrefetchScalarGridSpec(
            num_scalar_prefetch=0,
            grid=grid,
            in_specs=[
                pl.BlockSpec((1, C, t_hw), lambda n, t: (n, 0, t)),   # low
                pl.BlockSpec((1, C, t_hw), lambda n, t: (n, 0, t)),   # high
                pl.BlockSpec((1, C, 1), lambda n, t: (n, 0, 0)),      # ca gate
                pl.BlockSpec((Cmid, C), lambda n, t: (0, 0)),         # pa w1
                pl.BlockSpec((Cmid, 1), lambda n, t: (0, 0)),         # pa b1
                pl.BlockSpec((Cmid, 1), lambda n, t: (0, 0)),         # pa w2 col
                pl.BlockSpec((1, 1), lambda n, t: (0, 0)),            # pa b2
            ],
            out_specs=pl.BlockSpec((1, C, t_hw), lambda n, t: (n, 0, t)),
        ),
        compiler_params=pltpu.CompilerParams(
            dimension_semantics=("parallel", "parallel"),
            vmem_limit_bytes=vmem_limit),
    )(low_p, high_p, ca_scale, pa_w1, pa_b1, pa_w2c, pa_b2)

    # Strip HW padding; (N, C, HW) -> (N, C, H, W) is a free reshape.
    if pad:
        out_p = out_p[:, :, :HW]
    return out_p.reshape(N, C, H, W)


def meu_forward(low_level, high_level, params, *, t_hw=2048):
    """Full Meu_module forward: convs via XLA, attention + fusion via Pallas."""
    low = _conv3x3_same(low_level, params["low_w"], params["low_b"])
    high = _deconv3x3_s2(high_level, params["high_w"], params["high_b"])
    return _fused_ca_pa_combine(low, high, params, t_hw_req=t_hw)


# ---------------------------------------------------------------------------
# Pure-JAX reference
# ---------------------------------------------------------------------------
def _reference_forward(low_level, high_level, p):
    low = _conv3x3_same(low_level, p["low_w"], p["low_b"])
    high = _deconv3x3_s2(high_level, p["high_w"], p["high_b"])

    # PALayer(low) -> (N, 1, H, W)
    h = jnp.einsum("mc,nchw->nmhw", p["pa_w1"], low) + p["pa_b1"][None, :, None, None]
    h = jnp.maximum(h, 0.0)
    pa = jax.nn.sigmoid(
        jnp.einsum("om,nmhw->nohw", p["pa_w2"], h) + p["pa_b2"][None, :, None, None])

    # CALayer(high) -> (N, C, 1, 1)
    pooled = jnp.mean(high, axis=(2, 3))                              # (N, C)
    hh = jnp.maximum(pooled @ p["ca_w1"].T + p["ca_b1"][None, :], 0.0)
    ca = jax.nn.sigmoid(hh @ p["ca_w2"].T + p["ca_b2"][None, :])      # (N, C)

    return low * ca[:, :, None, None] + high * pa


# ---------------------------------------------------------------------------
if __name__ == "__main__":
    key = jax.random.PRNGKey(0)
    N, low_c, high_c, H, W = 2, 32, 16, 16, 16    # low_c divisible by 8
    Cmid = low_c // 8
    k = jax.random.split(key, 14)

    low_level = jax.random.normal(k[0], (N, low_c, H, W), dtype=jnp.float32)
    high_level = jax.random.normal(k[1], (N, high_c, H // 2, W // 2), dtype=jnp.float32)

    params = {
        # low_conv: Conv2d(low_c, low_c, 3, padding=1), OIHW
        "low_w": jax.random.normal(k[2], (low_c, low_c, 3, 3), jnp.float32) * 0.05,
        "low_b": jax.random.normal(k[3], (low_c,), jnp.float32) * 0.05,
        # high_conv: ConvTranspose2d(high_c, low_c, 3, s=2, p=1, op=1), (in,out,kH,kW)
        "high_w": jax.random.normal(k[4], (high_c, low_c, 3, 3), jnp.float32) * 0.05,
        "high_b": jax.random.normal(k[5], (low_c,), jnp.float32) * 0.05,
        # CALayer(low_c): 1x1 conv weights stored as (out, in)
        "ca_w1": jax.random.normal(k[6], (Cmid, low_c), jnp.float32) * 0.1,
        "ca_b1": jax.random.normal(k[7], (Cmid,), jnp.float32) * 0.1,
        "ca_w2": jax.random.normal(k[8], (low_c, Cmid), jnp.float32) * 0.1,
        "ca_b2": jax.random.normal(k[9], (low_c,), jnp.float32) * 0.1,
        # PALayer(low_c)
        "pa_w1": jax.random.normal(k[10], (Cmid, low_c), jnp.float32) * 0.1,
        "pa_b1": jax.random.normal(k[11], (Cmid,), jnp.float32) * 0.1,
        "pa_w2": jax.random.normal(k[12], (1, Cmid), jnp.float32) * 0.1,
        "pa_b2": jax.random.normal(k[13], (1,), jnp.float32) * 0.1,
    }

    y = meu_forward(low_level, high_level, params)
    y = jax.block_until_ready(y)

    y_ref = _reference_forward(low_level, high_level, params)
    assert y.shape == (N, low_c, H, W), y.shape
    max_err = float(jnp.max(jnp.abs(y - y_ref)))
    assert max_err < 1e-4, f"mismatch vs reference: max abs err = {max_err}"

    print("KERNEL_OK")
</pallas_src>

<mosaic_0001>
module attributes {stable_mosaic.version = 11 : i64} {
  func.func @_ca_scale_kernel(%arg0: i32, %arg1: i32, %arg2: memref<1x32x256xf32, #tpu.memory_space<vmem>>, %arg3: memref<4x32xf32, #tpu.memory_space<vmem>>, %arg4: memref<4x1xf32, #tpu.memory_space<vmem>>, %arg5: memref<32x4xf32, #tpu.memory_space<vmem>>, %arg6: memref<32x1xf32, #tpu.memory_space<vmem>>, %arg7: memref<1x32x1xf32, #tpu.memory_space<vmem>>, %arg8: memref<32x1xf32, #tpu.memory_space<vmem>>) attributes {dimension_semantics = [#tpu.dimension_semantics<parallel>, #tpu.dimension_semantics<arbitrary>], iteration_bounds = array<i64: 2, 1>, scalar_prefetch = 0 : i64, scratch_operands = 1 : i64, tpu.core_type = #tpu.core_type<tc>, window_params = [{transform_indices = @transform_0, window_bounds = array<i64: 1, 32, 256>}, {pipeline_mode = #tpu.pipeline_mode<synchronous>, transform_indices = @transform_1, window_bounds = array<i64: 4, 32>}, {pipeline_mode = #tpu.pipeline_mode<synchronous>, transform_indices = @transform_2, window_bounds = array<i64: 4, 1>}, {pipeline_mode = #tpu.pipeline_mode<synchronous>, transform_indices = @transform_3, window_bounds = array<i64: 32, 4>}, {pipeline_mode = #tpu.pipeline_mode<synchronous>, transform_indices = @transform_4, window_bounds = array<i64: 32, 1>}, {transform_indices = @transform_5, window_bounds = array<i64: 1, 32, 1>}]} {
    %c0_i32 = arith.constant 0 : i32
    %0 = arith.cmpi eq, %arg1, %c0_i32 : i32
    %1 = arith.extui %0 : i1 to i32
    %c0_i32_0 = arith.constant 0 : i32
    %2 = arith.cmpi ne, %1, %c0_i32_0 : i32
    scf.if %2 {
      %cst_9 = arith.constant 0.000000e+00 : f32
      %13 = vector.broadcast %cst_9 : f32 to vector<32x1xf32>
      %c0_10 = arith.constant 0 : index
      %c0_11 = arith.constant 0 : index
      %14 = vector.load %arg8[%c0_10, %c0_11] : memref<32x1xf32, #tpu.memory_space<vmem>>, vector<32x1xf32>
      tpu.vector_store %arg8[%c0_10, %c0_11], %13 {strides = array<i32>} : memref<32x1xf32, #tpu.memory_space<vmem>>, vector<32x1xf32>,
    } else {
    }
    %c0 = arith.constant 0 : index
    %c0_1 = arith.constant 0 : index
    %3 = vector.load %arg8[%c0, %c0_1] : memref<32x1xf32, #tpu.memory_space<vmem>>, vector<32x1xf32>
    %c0_2 = arith.constant 0 : index
    %c0_3 = arith.constant 0 : index
    %c0_4 = arith.constant 0 : index
    %4 = vector.load %arg2[%c0_2, %c0_3, %c0_4] : memref<1x32x256xf32, #tpu.memory_space<vmem>>, vector<1x32x256xf32>
    %5 = vector.shape_cast %4 : vector<1x32x256xf32> to vector<32x256xf32>
    %cst = arith.constant dense<0.000000e+00> : vector<32xf32>
    %6 = vector.multi_reduction <add>, %5, %cst [1] : vector<32x256xf32> to vector<32xf32>
    %7 = vector.shape_cast %6 : vector<32xf32> to vector<32x1xf32>
    %8 = arith.addf %3, %7 : vector<32x1xf32>
    %c0_5 = arith.constant 0 : index
    %c0_6 = arith.constant 0 : index
    %9 = vector.load %arg8[%c0_5, %c0_6] : memref<32x1xf32, #tpu.memory_space<vmem>>, vector<32x1xf32>
    tpu.vector_store %arg8[%c0_5, %c0_6], %8 {strides = array<i32>} : memref<32x1xf32, #tpu.memory_space<vmem>>, vector<32x1xf32>,
    %c0_i32_7 = arith.constant 0 : i32
    %10 = arith.cmpi eq, %arg1, %c0_i32_7 : i32
    %11 = arith.extui %10 : i1 to i32
    %c0_i32_8 = arith.constant 0 : i32
    %12 = arith.cmpi ne, %11, %c0_i32_8 : i32
    scf.if %12 {
      %c0_9 = arith.constant 0 : index
      %c0_10 = arith.constant 0 : index
      %13 = vector.load %arg8[%c0_9, %c0_10] : memref<32x1xf32, #tpu.memory_space<vmem>>, vector<32x1xf32>
      %cst_11 = arith.constant 3.906250e-03 : f32
      %14 = vector.broadcast %cst_11 : f32 to vector<32x1xf32>
      %15 = arith.mulf %13, %14 : vector<32x1xf32>
      %c0_12 = arith.constant 0 : index
      %c0_13 = arith.constant 0 : index
      %16 = vector.load %arg3[%c0_12, %c0_13] : memref<4x32xf32, #tpu.memory_space<vmem>>, vector<4x32xf32>
      %cst_14 = arith.constant dense<0.000000e+00> : vector<4x1xf32>
      %17 = tpu.matmul %16, %15, %cst_14 {dimension_numbers = #tpu.dot_dimension_numbers<[1], [0], [0], [1], [0, 0, 1, 1], [], []>} : vector<4x32xf32>, vector<32x1xf32>, vector<4x1xf32> -> vector<4x1xf32>
      %c0_15 = arith.constant 0 : index
      %c0_16 = arith.constant 0 : index
      %18 = vector.load %arg4[%c0_15, %c0_16] : memref<4x1xf32, #tpu.memory_space<vmem>>, vector<4x1xf32>
      %19 = arith.addf %17, %18 : vector<4x1xf32>
      %cst_17 = arith.constant 0.000000e+00 : f32
      %20 = vector.broadcast %cst_17 : f32 to vector<4x1xf32>
      %21 = arith.maximumf %19, %20 : vector<4x1xf32>
      %c0_18 = arith.constant 0 : index
      %c0_19 = arith.constant 0 : index
      %22 = vector.load %arg5[%c0_18, %c0_19] : memref<32x4xf32, #tpu.memory_space<vmem>>, vector<32x4xf32>
      %cst_20 = arith.constant dense<0.000000e+00> : vector<32x1xf32>
      %23 = tpu.matmul %22, %21, %cst_20 {dimension_numbers = #tpu.dot_dimension_numbers<[1], [0], [0], [1], [0, 0, 1, 1], [], []>} : vector<32x4xf32>, vector<4x1xf32>, vector<32x1xf32> -> vector<32x1xf32>
      %c0_21 = arith.constant 0 : index
      %c0_22 = arith.constant 0 : index
      %24 = vector.load %arg6[%c0_21, %c0_22] : memref<32x1xf32, #tpu.memory_space<vmem>>, vector<32x1xf32>
      %25 = arith.addf %23, %24 : vector<32x1xf32>
      %26 = arith.negf %25 : vector<32x1xf32>
      %27 = math.exp %26 : vector<32x1xf32>
      %cst_23 = arith.constant 1.000000e+00 : f32
      %28 = vector.broadcast %cst_23 : f32 to vector<32x1xf32>
      %29 = arith.addf %28, %27 : vector<32x1xf32>
      %30 = arith.divf %28, %29 : vector<32x1xf32>
      %c0_24 = arith.constant 0 : index
      %c0_25 = arith.constant 0 : index
      %c0_26 = arith.constant 0 : index
      %31 = vector.load %arg7[%c0_24, %c0_25, %c0_26] : memref<1x32x1xf32, #tpu.memory_space<vmem>>, vector<1x32x1xf32>
      %32 = vector.shape_cast %31 : vector<1x32x1xf32> to vector<32x1xf32>
      %33 = vector.shape_cast %30 : vector<32x1xf32> to vector<1x32x1xf32>
      tpu.vector_store %arg7[%c0_24, %c0_25, %c0_26], %33 {strides = array<i32>} : memref<1x32x1xf32, #tpu.memory_space<vmem>>, vector<1x32x1xf32>,
    } else {
    }
    return
  }
  func.func @transform_0(%arg0: i32, %arg1: i32) -> (i32, i32, i32) {
    %c0_i32 = arith.constant 0 : i32
    %c0_i32_0 = arith.constant 0 : i32
    return %arg0, %c0_i32, %arg1 : i32, i32, i32
  }
  func.func @transform_1(%arg0: i32, %arg1: i32) -> (i32, i32) {
    %c0_i32 = arith.constant 0 : i32
    %c0_i32_0 = arith.constant 0 : i32
    %c0_i32_1 = arith.constant 0 : i32
    return %c0_i32, %c0_i32_0 : i32, i32
  }
  func.func @transform_2(%arg0: i32, %arg1: i32) -> (i32, i32) {
    %c0_i32 = arith.constant 0 : i32
    %c0_i32_0 = arith.constant 0 : i32
    %c0_i32_1 = arith.constant 0 : i32
    return %c0_i32, %c0_i32_0 : i32, i32
  }
  func.func @transform_3(%arg0: i32, %arg1: i32) -> (i32, i32) {
    %c0_i32 = arith.constant 0 : i32
    %c0_i32_0 = arith.constant 0 : i32
    %c0_i32_1 = arith.constant 0 : i32
    return %c0_i32, %c0_i32_0 : i32, i32
  }
  func.func @transform_4(%arg0: i32, %arg1: i32) -> (i32, i32) {
    %c0_i32 = arith.constant 0 : i32
    %c0_i32_0 = arith.constant 0 : i32
    %c0_i32_1 = arith.constant 0 : i32
    return %c0_i32, %c0_i32_0 : i32, i32
  }
  func.func @transform_5(%arg0: i32, %arg1: i32) -> (i32, i32, i32) {
    %c0_i32 = arith.constant 0 : i32
    %c0_i32_0 = arith.constant 0 : i32
    %c0_i32_1 = arith.constant 0 : i32
    return %arg0, %c0_i32, %c0_i32_0 : i32, i32, i32
  }
}

</mosaic_0001>

<llo_original>
// kernel: tpu_custom_call.1
$region0: #{tpu_custom_call.1}
  #allocation0 [shape = 'u32[]', space=smem, size = 0x4, offset = 0x4, fixed_abs, tag = 'smem constant byte address 0x4 - core index']
  #allocation1 [shape = 'u32[144,128]{1,0:T(1,128)}', space=vmem, size = 0x12000, scoped, tag = 'internal scratch']
  #allocation2 [shape = 'f32[32,1]{1,0:T(8,128)}', space=vmem, size = 0x4000, scoped, tag = 'scratch operand']
  %s0 = inlined_call_operand.hbm [shape: f32[2,32,256], index: 0, kind: input, shape index: {}]
  %s1 = inlined_call_operand.vmem [shape: f32[4,32], index: 1, kind: input, shape index: {}]
  %s2 = inlined_call_operand.vmem [shape: f32[4,1], index: 2, kind: input, shape index: {}]
  %s3 = inlined_call_operand.vmem [shape: f32[32,4], index: 3, kind: input, shape index: {}]
  %s4 = inlined_call_operand.vmem [shape: f32[32,1], index: 4, kind: input, shape index: {}]
  %s5 = inlined_call_operand.vmem [shape: f32[2,32,1], index: 5, kind: output, shape index: {}]
  %s6 = sld [smem:[#allocation0]]
  $region65: #{tpu_custom_call.1} parent=0
    _
  %s8 = ssub.s32 1, %s6
  %s9 = scalar_select 0, %s8, %s6
  $region1: #{tpu_custom_call.1} parent=0
    #allocation3 [shape = 'u8[65536]{0}', space=vmem, size = 0x10000, scoped, tag = 'input window, operand 0']
    #allocation4 [shape = 's32[2]{0}', space=sflag, size = 0x8, scoped, tag = 'scoped memory for tpu_custom_call.1']
    %10 = vsyncpa [#allocation4], 0
    %s11 = scalar_lea.sflag [#allocation4], 1
    %12 = vsyncpa %s11, 0
    loop: start=0, step=1, limit=4
    $region2: #{tpu_custom_call.1} parent=1 // loop_pre_header
      _
    $region3: #{tpu_custom_call.1} parent=1 // loop_header
      %s14 = sphi 0, %s18
      %p15 = scmp.ge.s32.totalorder %s14, 4
      %s21 = sphi 0, %s33
      %s22 = sphi 0, %s29
      %s23 = sphi 0, %s21
      %s24 = sphi 0, %s22
      %s25 = sphi 0, %s23
      %s26 = sphi 0, %s24
      %s38 = sphi 0, %s40
      %s41 = sphi 0, %s38
      %s42 = sphi 0, %s41
      %s58 = sphi 0, %s42
      %s62 = sphi 0, %s62
      %s64 = sphi 0, %s62
      %s65 = sphi 0, %s64
      %s79 = sphi 0, %s65
      %s83 = sphi 0, %s83
      %s85 = sphi 0, %s83
      %s86 = sphi 0, %s85
      %s100 = sphi 0, %s86
      %s104 = sphi 0, %s104
      %s106 = sphi 0, %s104
      %s107 = sphi 0, %s106
      %s121 = sphi 0, %s107
      %s125 = sphi 0, %s125
      %s127 = sphi 0, %s125
      %s128 = sphi 0, %s127
      %s142 = sphi 0, %s128
      %s148 = sphi 0, %s150
      %s151 = sphi 0, %s148
      %s152 = sphi 0, %s151
      %s168 = sphi 0, %s152
    $region4: #{tpu_custom_call.1} parent=1 // loop_header_branch
      %17 = sbr.rel (%p15) target = $region8
    $region5: #{tpu_custom_call.1} parent=1 // loop_body
      %s19 = ssub.s32 %s14, 1
      %s20 = ssub.s32 %s14, 2
      %s27 = sadd.s32 1, %s22
      %p28 = scmp.ge.s32.totalorder %s27, 1
      %s29 = scalar_select %p28, 0, %s27
      %s30 = sadd.s32 1, %s21
      %s31 = scalar_select %p28, %s30, %s21
      %p32 = scmp.ge.s32.totalorder %s31, 2
      %s33 = scalar_select %p32, 0, %s31
      %s34 = ssub.s32 %s21, %s33
      %s35 = ssub.s32 %s22, %s29
      %s36 = sor.u32 %s34, %s35
      %p37 = scmp.eq.s32.totalorder %s36, 0
      %s39 = sadd.s32 %s38, 1
      %s40 = scalar_select %p37, %s38, %s39
      %p43 = pneg %p37
      %p44 = scmp.eq.s32.totalorder %s14, 1
      %p45 = por %p43, %p44
      %p46 = scmp.ne.s32.totalorder %s38, %s41
      %p47 = scmp.eq.s32.totalorder %s14, 0
      %p48 = por %p46, %p47
      %p49 = scmp.ne.s32.totalorder %s38, %s41
      %p50 = scmp.eq.s32.totalorder %s19, 1
      %p51 = por %p49, %p50
      %p52 = scmp.ne.s32.totalorder %s41, %s42
      %p53 = scmp.eq.s32.totalorder %s19, 0
      %p54 = por %p52, %p53
      %p55 = scmp.ne.s32.totalorder %s41, %s42
      %p56 = scmp.eq.s32.totalorder %s20, 1
      %p57 = por %p55, %p56
      %p59 = scmp.ne.s32.totalorder %s42, %s58
      %p60 = scmp.eq.s32.totalorder %s20, 0
      %p61 = por %p59, %p60
      %s63 = sadd.s32 %s62, 1
      %p66 = scmp.eq.s32.totalorder %s14, 1
      %p67 = scmp.ne.s32.totalorder %s62, %s64
      %p68 = scmp.eq.s32.totalorder %s14, 0
      %p69 = por %p67, %p68
      %p70 = scmp.ne.s32.totalorder %s62, %s64
      %p71 = scmp.eq.s32.totalorder %s19, 1
      %p72 = por %p70, %p71
      %p73 = scmp.ne.s32.totalorder %s64, %s65
      %p74 = scmp.eq.s32.totalorder %s19, 0
      %p75 = por %p73, %p74
      %p76 = scmp.ne.s32.totalorder %s64, %s65
      %p77 = scmp.eq.s32.totalorder %s20, 1
      %p78 = por %p76, %p77
      %p80 = scmp.ne.s32.totalorder %s65, %s79
      %p81 = scmp.eq.s32.totalorder %s20, 0
      %p82 = por %p80, %p81
      %s84 = sadd.s32 %s83, 1
      %p87 = scmp.eq.s32.totalorder %s14, 1
      %p88 = scmp.ne.s32.totalorder %s83, %s85
      %p89 = scmp.eq.s32.totalorder %s14, 0
      %p90 = por %p88, %p89
      %p91 = scmp.ne.s32.totalorder %s83, %s85
      %p92 = scmp.eq.s32.totalorder %s19, 1
      %p93 = por %p91, %p92
      %p94 = scmp.ne.s32.totalorder %s85, %s86
      %p95 = scmp.eq.s32.totalorder %s19, 0
      %p96 = por %p94, %p95
      %p97 = scmp.ne.s32.totalorder %s85, %s86
      %p98 = scmp.eq.s32.totalorder %s20, 1
      %p99 = por %p97, %p98
      %p101 = scmp.ne.s32.totalorder %s86, %s100
      %p102 = scmp.eq.s32.totalorder %s20, 0
      %p103 = por %p101, %p102
      %s105 = sadd.s32 %s104, 1
      %p108 = scmp.eq.s32.totalorder %s14, 1
      %p109 = scmp.ne.s32.totalorder %s104, %s106
      %p110 = scmp.eq.s32.totalorder %s14, 0
      %p111 = por %p109, %p110
      %p112 = scmp.ne.s32.totalorder %s104, %s106
      %p113 = scmp.eq.s32.totalorder %s19, 1
      %p114 = por %p112, %p113
      %p115 = scmp.ne.s32.totalorder %s106, %s107
      %p116 = scmp.eq.s32.totalorder %s19, 0
      %p117 = por %p115, %p116
      %p118 = scmp.ne.s32.totalorder %s106, %s107
      %p119 = scmp.eq.s32.totalorder %s20, 1
      %p120 = por %p118, %p119
      %p122 = scmp.ne.s32.totalorder %s107, %s121
      %p123 = scmp.eq.s32.totalorder %s20, 0
      %p124 = por %p122, %p123
      %s126 = sadd.s32 %s125, 1
      %p129 = scmp.eq.s32.totalorder %s14, 1
      %p130 = scmp.ne.s32.totalorder %s125, %s127
      %p131 = scmp.eq.s32.totalorder %s14, 0
      %p132 = por %p130, %p131
      %p133 = scmp.ne.s32.totalorder %s125, %s127
      %p134 = scmp.eq.s32.totalorder %s19, 1
      %p135 = por %p133, %p134
      %p136 = scmp.ne.s32.totalorder %s127, %s128
      %p137 = scmp.eq.s32.totalorder %s19, 0
      %p138 = por %p136, %p137
      %p139 = scmp.ne.s32.totalorder %s127, %s128
      %p140 = scmp.eq.s32.totalorder %s20, 1
      %p141 = por %p139, %p140
      %p143 = scmp.ne.s32.totalorder %s128, %s142
      %p144 = scmp.eq.s32.totalorder %s20, 0
      %p145 = por %p143, %p144
      %s146 = ssub.s32 %s21, %s33
      %p147 = scmp.eq.s32.totalorder %s146, 0
      %s149 = sadd.s32 %s148, 1
      %s150 = scalar_select %p147, %s148, %s149
      %p153 = pneg %p147
      %p154 = scmp.eq.s32.totalorder %s14, 1
      %p155 = por %p153, %p154
      %p156 = scmp.ne.s32.totalorder %s148, %s151
      %p157 = scmp.eq.s32.totalorder %s14, 0
      %p158 = por %p156, %p157
      %p159 = scmp.ne.s32.totalorder %s148, %s151
      %p160 = scmp.eq.s32.totalorder %s19, 1
      %p161 = por %p159, %p160
      %p162 = scmp.ne.s32.totalorder %s151, %s152
      %p163 = scmp.eq.s32.totalorder %s19, 0
      %p164 = por %p162, %p163
      %p165 = scmp.ne.s32.totalorder %s151, %s152
      %p166 = scmp.eq.s32.totalorder %s20, 1
      %p167 = por %p165, %p166
      %p169 = scmp.ne.s32.totalorder %s152, %s168
      %p170 = scmp.eq.s32.totalorder %s20, 0
      %p171 = por %p169, %p170
      %p172 = scmp.le.s32.totalorder 1, %s14
      %p173 = scmp.lt.s32.totalorder %s14, 3
      %p174 = pnand %p172, %p173
      %p175 = pneg %p174
      // Predicated region
      $region9: #{tpu_custom_call.1} parent=5 // pred_check
        _
      $region10: #{tpu_custom_call.1} parent=5 // pred_check_branch
        %177 = sbr.rel (%p174) target = $region12
      $region11: #{tpu_custom_call.1} parent=5 // pred_region
        %s178 = ssub.s32 %s14, 1
        // Predicated region
        $region13: #{tpu_custom_call.1} parent=11 // pred_check
          %p179 = pneg %p75
        $region14: #{tpu_custom_call.1} parent=11 // pred_check_branch
          %181 = sbr.rel (%p179) target = $region16
        $region15: #{tpu_custom_call.1} parent=11 // pred_region
          _
        $region16: #{tpu_custom_call.1} parent=11 // pred_fallthru
          _
        // Predicated region
        $region17: #{tpu_custom_call.1} parent=11 // pred_check
          %p182 = pneg %p96
        $region18: #{tpu_custom_call.1} parent=11 // pred_check_branch
          %184 = sbr.rel (%p182) target = $region20
        $region19: #{tpu_custom_call.1} parent=11 // pred_region
          _
        $region20: #{tpu_custom_call.1} parent=11 // pred_fallthru
          _
        // Predicated region
        $region21: #{tpu_custom_call.1} parent=11 // pred_check
          %p185 = pneg %p117
        $region22: #{tpu_custom_call.1} parent=11 // pred_check_branch
          %187 = sbr.rel (%p185) target = $region24
        $region23: #{tpu_custom_call.1} parent=11 // pred_region
          _
        $region24: #{tpu_custom_call.1} parent=11 // pred_fallthru
          _
        // Predicated region
        $region25: #{tpu_custom_call.1} parent=11 // pred_check
          %p188 = pneg %p138
        $region26: #{tpu_custom_call.1} parent=11 // pred_check_branch
          %190 = sbr.rel (%p188) target = $region28
        $region27: #{tpu_custom_call.1} parent=11 // pred_region
          _
        $region28: #{tpu_custom_call.1} parent=11 // pred_fallthru
          _
      $region12: #{tpu_custom_call.1} parent=5 // pred_fallthru
        _
      %p191 = scmp.lt.s32.totalorder %s14, 2
      // Predicated region
      $region29: #{tpu_custom_call.1} parent=5 // pred_check
        %p192 = pneg %p191
      $region30: #{tpu_custom_call.1} parent=5 // pred_check_branch
        %194 = sbr.rel (%p192) target = $region32
      $region31: #{tpu_custom_call.1} parent=5 // pred_region
        // Predicated region
        $region33: #{tpu_custom_call.1} parent=31 // pred_check
          %p195 = pneg %p48
        $region34: #{tpu_custom_call.1} parent=31 // pred_check_branch
          %197 = sbr.rel (%p195) target = $region36
        $region35: #{tpu_custom_call.1} parent=31 // pred_region
          %s198 = sand.u32 %s38, 1
          %s199 = scalar_lea.sflag [#allocation4], %s198
          %s200 = sand.u32 %s38, 1
          %s201 = smul.addr %s200, 64
          %s202 = scalar_lea.vmem [#allocation3], %s201
          %s203 = smul.u32 2, %s22
          %s205 = ssub.s32 1024, 1024
          %206 = vsyncadd %s199, %s205
          %s207 = smul.addr %s21, 8
          %s208 = sadd.s32 %s203, %s207
          %s209 = smul.addr %s208, 128
          %s210 = scalar_lea.hbm %s0, %s209
          %s211 = sshll.u32 %s202, 4
          %s212 = int_to_ptr.vmem [resolvable:$true] %s211
          %217 = dma.hbm_to_vmem [thread:$0]  %s210, 1024, %s212, %s199, 256, 256, 16
        $region36: #{tpu_custom_call.1} parent=31 // pred_fallthru
          _
      $region32: #{tpu_custom_call.1} parent=5 // pred_fallthru
        _
      %p218 = scmp.le.s32.totalorder 1, %s14
      %p219 = scmp.lt.s32.totalorder %s14, 3
      %p220 = pnand %p218, %p219
      %p221 = pneg %p220
      // Predicated region
      $region37: #{tpu_custom_call.1} parent=5 // pred_check
        _
      $region38: #{tpu_custom_call.1} parent=5 // pred_check_branch
        %223 = sbr.rel (%p220) target = $region40
      $region39: #{tpu_custom_call.1} parent=5 // pred_region
        %s224 = ssub.s32 %s14, 1
        %s225 = sand.u32 %s41, 1
        %s226 = scalar_lea.sflag [#allocation4], %s225
        %s227 = sand.u32 %s41, 1
        %s228 = smul.addr %s227, 64
        %s229 = scalar_lea.vmem [#allocation3], %s228
        // Predicated region
        $region41: #{tpu_custom_call.1} parent=39 // pred_check
          %p230 = pneg %p54
        $region42: #{tpu_custom_call.1} parent=39 // pred_check_branch
          %232 = sbr.rel (%p230) target = $region44
        $region43: #{tpu_custom_call.1} parent=39 // pred_region
          %233 = dma.done %s226, 1024
        $region44: #{tpu_custom_call.1} parent=39 // pred_fallthru
          _
        %s234 = sand.u32 %s41, 1
        %s235 = scalar_lea.sflag [#allocation4], %s234
        %s236 = sand.u32 %s41, 1
        %s237 = smul.addr %s236, 64
        %s238 = scalar_lea.vmem [#allocation3], %s237
        %p239 = pneg %p54
        %p240 = pneg %p51
        %p241 = pneg %p75
        %p242 = pneg %p72
        %p243 = pneg %p96
        %p244 = pneg %p93
        %p245 = pneg %p117
        %p246 = pneg %p114
        %p247 = pneg %p138
        %p248 = pneg %p135
        %p249 = pneg %p164
        %p250 = pneg %p161
        %p251 = scmp.lt.s32.totalorder %s23, 1
        %s252 = scalar_select %p251, %s23, 1
        %s253 = smul.addr %s252, 4
        %s254 = smul.addr %s253, 8
        %s255 = scalar_lea.vmem %s5, %s254
        %s256 = smul.u32 2, %s24
        %p257 = scmp.lt.s32.totalorder %s23, 1
        %s258 = scalar_select %p257, %s23, 1
        %s259 = smul.addr %s258, 4
        %s260 = smul.addr %s259, 8
        %s261 = scalar_lea.vmem %s5, %s260
        %p262 = scmp.eq.s32.totalorder %s24, 0
        // Predicated region
        $region45: #{tpu_custom_call.1} parent=39 // pred_check
          %p263 = pneg %p262
        $region46: #{tpu_custom_call.1} parent=39 // pred_check_branch
          %265 = sbr.rel (%p263) target = $region48
        $region47: #{tpu_custom_call.1} parent=39 // pred_region
          %vm266 = vcmask 7168
          %267 = vst.msk [vmem:[#allocation2] sm:$0xff] %vm266, 0.0
          %268 = vst.msk [vmem:[#allocation2 + $0x8] sm:$0xff] %vm266, 0.0
          %269 = vst.msk [vmem:[#allocation2 + $0x10] sm:$0xff] %vm266, 0.0
          %270 = vst.msk [vmem:[#allocation2 + $0x18] sm:$0xff] %vm266, 0.0
        $region48: #{tpu_custom_call.1} parent=39 // pred_fallthru
          _
        %v271 = vld [vmem:[#allocation2] sm:$0xff]
        %v272 = vld [vmem:[#allocation2 + $0x8] sm:$0xff]
        %v273 = vld [vmem:[#allocation2 + $0x10] sm:$0xff]
        %v274 = vld [vmem:[#allocation2 + $0x18] sm:$0xff]
        %v275 = vld [vmem:[%s229] sm:$0xff]
        %v276 = vld [vmem:[%s229 + $0x8] sm:$0xff]
        %v277 = vld [vmem:[%s229 + $0x10] sm:$0xff]
        %v278 = vld [vmem:[%s229 + $0x18] sm:$0xff]
        %v279 = vld [vmem:[%s229 + $0x20] sm:$0xff]
        %v280 = vld [vmem:[%s229 + $0x28] sm:$0xff]
        %v281 = vld [vmem:[%s229 + $0x30] sm:$0xff]
        %v282 = vld [vmem:[%s229 + $0x38] sm:$0xff]
        %v283 = vadd.f32 %v275, %v276
        %284 = vadd.xlane.f32.xlu0 %v283
        %v285 = vpop.xlane.xlu0 %284
        %v286 = vadd.f32 %v277, %v278
        %287 = vadd.xlane.f32.xlu0 %v286
        %v288 = vpop.xlane.xlu0 %287
        %v289 = vadd.f32 %v279, %v280
        %290 = vadd.xlane.f32.xlu0 %v289
        %v291 = vpop.xlane.xlu0 %290
        %v292 = vadd.f32 %v281, %v282
        %293 = vadd.xlane.f32.xlu0 %v292
        %v294 = vpop.xlane.xlu0 %293
        %v295 = vadd.f32 %v271, %v285
        %v296 = vadd.f32 %v272, %v288
        %v297 = vadd.f32 %v273, %v291
        %v298 = vadd.f32 %v274, %v294
        %vm299 = vcmask 7168
        %300 = vst.msk [vmem:[#allocation2] sm:$0xff] %vm299, %v295
        %301 = vst.msk [vmem:[#allocation2 + $0x8] sm:$0xff] %vm299, %v296
        %302 = vst.msk [vmem:[#allocation2 + $0x10] sm:$0xff] %vm299, %v297
        %303 = vst.msk [vmem:[#allocation2 + $0x18] sm:$0xff] %vm299, %v298
        // Predicated region
        $region49: #{tpu_custom_call.1} parent=39 // pred_check
          %p304 = pneg %p262
        $region50: #{tpu_custom_call.1} parent=39 // pred_check_branch
          %306 = sbr.rel (%p304) target = $region52
        $region51: #{tpu_custom_call.1} parent=39 // pred_region
          %v307 = vld [vmem:[#allocation2] sm:$0xff]
          %v308 = vld [vmem:[#allocation2 + $0x8] sm:$0xff]
          %v309 = vld [vmem:[#allocation2 + $0x10] sm:$0xff]
          %v310 = vld [vmem:[#allocation2 + $0x18] sm:$0xff]
          %v311 = vmul.f32 %v307, 0.00390625
          %v312 = vmul.f32 %v308, 0.00390625
          %v313 = vmul.f32 %v309, 0.00390625
          %v314 = vmul.f32 %v310, 0.00390625
          %v315 = vld [vmem:[%s1] sm:$0xf]
          %v316 = vld [vmem:[%s2] sm:$0xf]
          %vm317 = vcmask 261120
          %v319 = vsel %vm317, %v315, 0
          %321 = vmatprep.subr.mxu0 0.0
          %322 = vmatpush1.msra.mxu0 %v311
          %323 = vmatprep.subr.mxu0 0.0
          %324 = vmatpush1.msra.mxu0 %v312
          %325 = vmatprep.subr.mxu0 0.0
          %326 = vmatpush1.msra.mxu0 %v313
          %327 = vmatprep.subr.mxu0 0.0
          %328 = vmatpush1.msra.mxu0 %v314
          %329 = vmatprep.subr.mxu0 0.0
          %330 = vmatpush1.msra.mxu0 0.0
          %331 = vmatprep.subr.mxu0 0.0
          %332 = vmatpush1.msra.mxu0 0.0
          %333 = vmatprep.subr.mxu0 0.0
          %334 = vmatpush1.msra.mxu0 0.0
          %335 = vmatprep.subr.mxu0 0.0
          %336 = vmatpush1.msra.mxu0 0.0
          %337 = vmatprep.subr.mxu0 0.0
          %338 = vmatpush1.msra.mxu0 0.0
          %339 = vmatprep.subr.mxu0 0.0
          %340 = vmatpush1.msra.mxu0 0.0
          %341 = vmatprep.subr.mxu0 0.0
          %342 = vmatpush1.msra.mxu0 0.0
          %343 = vmatprep.subr.mxu0 0.0
          %344 = vmatpush1.msra.mxu0 0.0
          %345 = vmatprep.subr.mxu0 0.0
          %346 = vmatpush1.msra.mxu0 0.0
          %347 = vmatprep.subr.mxu0 0.0
          %348 = vmatpush1.msra.mxu0 0.0
          %349 = vmatprep.subr.mxu0 0.0
          %350 = vmatpush1.msra.mxu0 0.0
          %351 = vmatprep.subr.mxu0 0.0
          %352 = vmatpush1.msra.mxu0 0.0
          %353 = vmatprep.subr.mxu0 0.0
          %354 = vmatpush1.msra.mxu0 0.0
          %355 = vmatprep.subr.mxu0 0.0
          %356 = vmatpush1.msra.mxu0 0.0
          %357 = vmatprep.subr.mxu0 0.0
          %358 = vmatpush1.msra.mxu0 0.0
          %359 = vmatprep.subr.mxu0 0.0
          %360 = vmatpush1.msra.mxu0 0.0
          %361 = vmatprep.subr.mxu0 0.0
          %362 = vmatpush1.msra.mxu0 0.0
          %363 = vmatprep.subr.mxu0 0.0
          %364 = vmatpush1.msra.mxu0 0.0
          %365 = vmatprep.subr.mxu0 0.0
          %366 = vmatpush1.msra.mxu0 0.0
          %367 = vmatprep.subr.mxu0 0.0
          %368 = vmatpush1.msra.mxu0 0.0
          %369 = vmatprep.subr.mxu0 0.0
          %370 = vmatpush1.msra.mxu0 0.0
          %371 = vmatprep.subr.mxu0 0.0
          %372 = vmatpush1.msra.mxu0 0.0
          %373 = vmatprep.subr.mxu0 0.0
          %374 = vmatpush1.msra.mxu0 0.0
          %375 = vmatprep.subr.mxu0 0.0
          %376 = vmatpush1.msra.mxu0 0.0
          %377 = vmatprep.subr.mxu0 0.0
          %378 = vmatpush1.msra.mxu0 0.0
          %379 = vmatprep.subr.mxu0 0.0
          %380 = vmatpush1.msra.mxu0 0.0
          %381 = vmatprep.subr.mxu0 0.0
          %382 = vmatpush1.msra.mxu0 0.0
          %383 = vmatprep.subr.mxu0 0.0
          %384 = vmatpush1.msra.mxu0 0.0
          %385 = vmatprep.mubr.f32.mxu0 0.0
          %386 = vmatmul.mubr.f32.gmra.mrb[0].mxu0 %v319
          %v387 = vpop.f32.mrb[0].mxu0
          %v388 = vadd.f32 %v316, %v387
          %v389 = vpop.f32.mrb[0].mxu0
          %390 = vdwg.mxu0
          %v391 = vmax.f32 %v388, 0.0
          %v392 = vld [vmem:[%s3] sm:$0xff]
          %v393 = vld [vmem:[%s3 + $0x8] sm:$0xff]
          %v394 = vld [vmem:[%s3 + $0x10] sm:$0xff]
          %v395 = vld [vmem:[%s3 + $0x18] sm:$0xff]
          %v396 = vld [vmem:[%s4] sm:$0xff]
          %v397 = vld [vmem:[%s4 + $0x8] sm:$0xff]
          %v398 = vld [vmem:[%s4 + $0x10] sm:$0xff]
          %v399 = vld [vmem:[%s4 + $0x18] sm:$0xff]
          %vm400 = vcmask 31744
          %v402 = vsel %vm400, %v392, 0
          %v405 = vsel %vm400, %v393, 0
          %v408 = vsel %vm400, %v394, 0
          %v411 = vsel %vm400, %v395, 0
          %vm413 = vcmask 1043456
          %v415 = vsel %vm413, %v391, 0
          %417 = vmatprep.subr.mxu0 0.0
          %418 = vmatpush1.msra.mxu0 %v415
          %419 = vmatprep.subr.mxu0 0.0
          %420 = vmatpush1.msra.mxu0 0.0
          %421 = vmatprep.subr.mxu0 0.0
          %422 = vmatpush1.msra.mxu0 0.0
          %423 = vmatprep.subr.mxu0 0.0
          %424 = vmatpush1.msra.mxu0 0.0
          %425 = vmatprep.subr.mxu0 0.0
          %426 = vmatpush1.msra.mxu0 0.0
          %427 = vmatprep.subr.mxu0 0.0
          %428 = vmatpush1.msra.mxu0 0.0
          %429 = vmatprep.subr.mxu0 0.0
          %430 = vmatpush1.msra.mxu0 0.0
          %431 = vmatprep.subr.mxu0 0.0
          %432 = vmatpush1.msra.mxu0 0.0
          %433 = vmatprep.subr.mxu0 0.0
          %434 = vmatpush1.msra.mxu0 0.0
          %435 = vmatprep.subr.mxu0 0.0
          %436 = vmatpush1.msra.mxu0 0.0
          %437 = vmatprep.subr.mxu0 0.0
          %438 = vmatpush1.msra.mxu0 0.0
          %439 = vmatprep.subr.mxu0 0.0
          %440 = vmatpush1.msra.mxu0 0.0
          %441 = vmatprep.subr.mxu0 0.0
          %442 = vmatpush1.msra.mxu0 0.0
          %443 = vmatprep.subr.mxu0 0.0
          %444 = vmatpush1.msra.mxu0 0.0
          %445 = vmatprep.subr.mxu0 0.0
          %446 = vmatpush1.msra.mxu0 0.0
          %447 = vmatprep.subr.mxu0 0.0
          %448 = vmatpush1.msra.mxu0 0.0
          %449 = vmatprep.subr.mxu0 0.0
          %450 = vmatpush1.msra.mxu0 0.0
          %451 = vmatprep.subr.mxu0 0.0
          %452 = vmatpush1.msra.mxu0 0.0
          %453 = vmatprep.subr.mxu0 0.0
          %454 = vmatpush1.msra.mxu0 0.0
          %455 = vmatprep.subr.mxu0 0.0
          %456 = vmatpush1.msra.mxu0 0.0
          %457 = vmatprep.subr.mxu0 0.0
          %458 = vmatpush1.msra.mxu0 0.0
          %459 = vmatprep.subr.mxu0 0.0
          %460 = vmatpush1.msra.mxu0 0.0
          %461 = vmatprep.subr.mxu0 0.0
          %462 = vmatpush1.msra.mxu0 0.0
          %463 = vmatprep.subr.mxu0 0.0
          %464 = vmatpush1.msra.mxu0 0.0
          %465 = vmatprep.subr.mxu0 0.0
          %466 = vmatpush1.msra.mxu0 0.0
          %467 = vmatprep.subr.mxu0 0.0
          %468 = vmatpush1.msra.mxu0 0.0
          %469 = vmatprep.subr.mxu0 0.0
          %470 = vmatpush1.msra.mxu0 0.0
          %471 = vmatprep.subr.mxu0 0.0
          %472 = vmatpush1.msra.mxu0 0.0
          %473 = vmatprep.subr.mxu0 0.0
          %474 = vmatpush1.msra.mxu0 0.0
          %475 = vmatprep.subr.mxu0 0.0
          %476 = vmatpush1.msra.mxu0 0.0
          %477 = vmatprep.subr.mxu0 0.0
          %478 = vmatpush1.msra.mxu0 0.0
          %479 = vmatprep.subr.mxu0 0.0
          %480 = vmatpush1.msra.mxu0 0.0
          %481 = vmatprep.mubr.f32.mxu0 0.0
          %482 = vmatmul.mubr.f32.gmra.mrb[0].mxu0 %v402
          %v483 = vpop.f32.mrb[0].mxu0
          %v484 = vadd.f32 %v396, %v483
          %v485 = vpop.f32.mrb[0].mxu0
          %486 = vmatprep.mubr.f32.mxu0 0.0
          %487 = vmatmul.mubr.f32.gmra.mrb[0].mxu0 %v405
          %v488 = vpop.f32.mrb[0].mxu0
          %v489 = vadd.f32 %v397, %v488
          %v490 = vpop.f32.mrb[0].mxu0
          %491 = vmatprep.mubr.f32.mxu0 0.0
          %492 = vmatmul.mubr.f32.gmra.mrb[0].mxu0 %v408
          %v493 = vpop.f32.mrb[0].mxu0
          %v494 = vadd.f32 %v398, %v493
          %v495 = vpop.f32.mrb[0].mxu0
          %496 = vmatprep.mubr.f32.mxu0 0.0
          %497 = vmatmul.mubr.f32.gmra.mrb[0].mxu0 %v411
          %v498 = vpop.f32.mrb[0].mxu0
          %v499 = vadd.f32 %v399, %v498
          %v500 = vpop.f32.mrb[0].mxu0
          %501 = vdwg.mxu0
          %v502 = vxor.u32 %v484, 2147483648
          %v503 = vxor.u32 %v489, 2147483648
          %v504 = vxor.u32 %v494, 2147483648
          %v505 = vxor.u32 %v499, 2147483648
          %v506 = vmul.f32 %v502, 1.442695
          %v507 = vpow.pop %v506
          %v508 = vmul.f32 %v503, 1.442695
          %v509 = vpow.pop %v508
          %v510 = vmul.f32 %v504, 1.442695
          %v511 = vpow.pop %v510
          %v512 = vmul.f32 %v505, 1.442695
          %v513 = vpow.pop %v512
          %v514 = vadd.f32 %v507, 1.0
          %v515 = vadd.f32 %v509, 1.0
          %v516 = vadd.f32 %v511, 1.0
          %v517 = vadd.f32 %v513, 1.0
          %v518 = vrcp.pop %v514
          %v519 = vmul.f32 1.0, %v518
          %v520 = vrcp.pop %v515
          %v521 = vmul.f32 1.0, %v520
          %v522 = vrcp.pop %v516
          %v523 = vmul.f32 1.0, %v522
          %v524 = vrcp.pop %v517
          %v525 = vmul.f32 1.0, %v524
          %526 = vst.msk [vmem:[%s261] sm:$0xff] %vm299, %v519
          %527 = vst.msk [vmem:[%s261 + $0x8] sm:$0xff] %vm299, %v521
          %528 = vst.msk [vmem:[%s261 + $0x10] sm:$0xff] %vm299, %v523
          %529 = vst.msk [vmem:[%s261 + $0x18] sm:$0xff] %vm299, %v525
        $region52: #{tpu_custom_call.1} parent=39 // pred_fallthru
          _
        %p530 = scmp.lt.s32.totalorder %s23, 1
        %s531 = scalar_select %p530, %s23, 1
        %s532 = smul.addr %s531, 4
        %s533 = smul.addr %s532, 8
        %s534 = scalar_lea.vmem %s5, %s533
        // Predicated region
        $region53: #{tpu_custom_call.1} parent=39 // pred_check
          %p535 = pneg %p161
        $region54: #{tpu_custom_call.1} parent=39 // pred_check_branch
          %537 = sbr.rel (%p535) target = $region56
        $region55: #{tpu_custom_call.1} parent=39 // pred_region
          _
        $region56: #{tpu_custom_call.1} parent=39 // pred_fallthru
          _
      $region40: #{tpu_custom_call.1} parent=5 // pred_fallthru
        _
      %p538 = scmp.le.s32.totalorder 2, %s14
      // Predicated region
      $region57: #{tpu_custom_call.1} parent=5 // pred_check
        %p539 = pneg %p538
      $region58: #{tpu_custom_call.1} parent=5 // pred_check_branch
        %541 = sbr.rel (%p539) target = $region60
      $region59: #{tpu_custom_call.1} parent=5 // pred_region
        %s542 = ssub.s32 %s14, 2
        // Predicated region
        $region61: #{tpu_custom_call.1} parent=59 // pred_check
          %p543 = pneg %p167
        $region62: #{tpu_custom_call.1} parent=59 // pred_check_branch
          %545 = sbr.rel (%p543) target = $region64
        $region63: #{tpu_custom_call.1} parent=59 // pred_region
          %p546 = scmp.lt.s32.totalorder %s25, 1
          %s547 = scalar_select %p546, %s25, 1
          %s548 = smul.addr %s547, 4
          %s549 = smul.addr %s548, 8
          %s550 = scalar_lea.vmem %s5, %s549
        $region64: #{tpu_custom_call.1} parent=59 // pred_fallthru
          _
      $region60: #{tpu_custom_call.1} parent=5 // pred_fallthru
        _
    $region6: #{tpu_custom_call.1} parent=1 // loop_footer
      %s18 = sadd.s32 1, %s14
    $region7: #{tpu_custom_call.1} parent=1 // loop_footer_branch
      %13 = sbr.rel target = $region3
    $region8: #{tpu_custom_call.1} parent=1 // loop_exit
      _
    %551 = vsyncpa [#allocation4], 1
    %s552 = scalar_lea.sflag [#allocation4], 1
    %553 = vsyncpa %s552, 1

</llo_original>
